<compile_context>
chip_gen: v7x
topology: tpu7x:2x2x1
jax: 0.10.0
libtpu: 0.0.40
codegen_flags: <defaults>
</compile_context>

<pallas_src>
import jax
import jax.numpy as jnp
from jax.experimental import pallas as pl
from jax.experimental.pallas import tpu as pltpu


def _round_up(x, m):
    return ((x + m - 1) // m) * m


def _sigmoid(x):
    # tanh-form sigmoid: routed through the EUP, numerically stable.
    return 0.5 * (jnp.tanh(0.5 * x) + 1.0)


# --------------------------------------------------------------------------- kernel 1
def _proj_kernel(x_ref, w_ref, b_ref, words_ref, gates_ref):
    """words = tanh(x); gates = words @ [Wih_f|Wih_b] + (b_f|b_b)  (one big MXU matmul)."""
    x = jnp.tanh(x_ref[...])
    words_ref[...] = x
    gates_ref[...] = (
        jnp.dot(x, w_ref[...], preferred_element_type=jnp.float32) + b_ref[...]
    )


# --------------------------------------------------------------------------- kernel 2
def _lstm_kernel(lens_ref, gin_ref, whh_ref, out_ref, hn_ref, h, c):
    """Bidirectional LSTM recurrence. grid = (direction, time-tile)."""
    d = pl.program_id(0)           # 0 = forward, 1 = backward
    tt = pl.program_id(1)          # time-tile index
    nt = pl.num_programs(1)
    TT, _, _ = gin_ref.shape
    Hp = h.shape[1]
    Tp = nt * TT

    @pl.when(tt == 0)
    def _():
        h[...] = jnp.zeros_like(h)
        c[...] = jnp.zeros_like(c)

    whh = whh_ref[...]             # (Hp, 4Hp) recurrent weights of this direction
    lens = lens_ref[...]           # (Bp, 1) int32 sequence lengths

    # Statically unrolled inner time loop (TT steps) -> LLO can interleave steps.
    for j in range(TT):
        s = jnp.where(d == 0, j, TT - 1 - j)          # index inside the gate tile
        g_idx = tt * TT + j
        t_abs = jnp.where(d == 0, g_idx, Tp - 1 - g_idx)   # chronological time
        mask = lens > t_abs                           # (Bp, 1) valid-step mask

        gates = gin_ref[s] + jnp.dot(h[...], whh,
                                     preferred_element_type=jnp.float32)
        # lane-aligned static gate slices (Hp is a multiple of 128)
        i_g = _sigmoid(gates[:, 0 * Hp:1 * Hp])
        f_g = _sigmoid(gates[:, 1 * Hp:2 * Hp])
        g_g = jnp.tanh(gates[:, 2 * Hp:3 * Hp])
        o_g = _sigmoid(gates[:, 3 * Hp:4 * Hp])
        c_new = f_g * c[...] + i_g * g_g
        h_new = o_g * jnp.tanh(c_new)

        h[...] = jnp.where(mask, h_new, h[...])
        c[...] = jnp.where(mask, c_new, c[...])
        out_ref[s] = jnp.where(mask, h_new, 0.0)      # padded steps emit zeros

    @pl.when(tt == nt - 1)
    def _():
        hn_ref[...] = h[...]


# --------------------------------------------------------------------------- wrapper
def _pad_gate_mat(w, in_dim_p, H, Hp):
    """(in_dim, 4H) -> (in_dim_p, 4*Hp): zero-pad each gate block to Hp lanes."""
    in_dim = w.shape[0]
    w4 = w.reshape(in_dim, 4, H)
    w4 = jnp.pad(w4, ((0, in_dim_p - in_dim), (0, 0), (0, Hp - H)))
    return w4.reshape(in_dim_p, 4 * Hp)


def input_unit_linguistic(params, questions, question_len):
    """questions: (B, T) int32, question_len: (B,) int32."""
    emb_tbl = params["embed"]                     # (V, D)
    B, T = questions.shape
    _, D = emb_tbl.shape
    H = params["wih_f"].shape[1] // 4             # per-direction hidden size

    # padded, hardware-friendly sizes
    Bp = _round_up(B, 8)                          # sublanes
    Hp = _round_up(H, 128)                        # lanes (gate slices vreg-aligned)
    Dp = _round_up(D, 128)
    TT = 8                                        # time steps per grid tile
    Tp = _round_up(T, TT)
    Rp = Tp * Bp                                  # rows of the hoisted projection matmul
    RT = 256 if Rp % 256 == 0 else (128 if Rp % 128 == 0 else 64)
    G = 8 * Hp                                    # fwd + bwd gate width

    # glue: gather embeddings directly into the padded time-major layout
    emb_tbl_p = jnp.pad(emb_tbl.astype(jnp.float32), ((0, 0), (0, Dp - D)))
    q_tm = jnp.pad(questions.T.astype(jnp.int32), ((0, Tp - T), (0, Bp - B)))
    emb2d = jnp.take(emb_tbl_p, q_tm.reshape(-1), axis=0)            # (Rp, Dp)

    # packed / padded weights (built once per call; cheap glue)
    w_ih = jnp.concatenate(
        [_pad_gate_mat(params["wih_f"], Dp, H, Hp),
         _pad_gate_mat(params["wih_b"], Dp, H, Hp)], axis=1)          # (Dp, 8Hp)
    b_all = jnp.concatenate(
        [_pad_gate_mat(params["b_f"], 1, H, Hp),
         _pad_gate_mat(params["b_b"], 1, H, Hp)], axis=1)             # (1, 8Hp)
    w_hh = jnp.concatenate(
        [_pad_gate_mat(params["whh_f"], Hp, H, Hp),
         _pad_gate_mat(params["whh_b"], Hp, H, Hp)], axis=0)          # (2Hp, 4Hp)
    lens = jnp.pad(question_len.astype(jnp.int32), (0, Bp - B))[:, None]  # (Bp, 1)

    # ---- kernel 1: hoisted input projection + tanh ----
    words2d, gates2d = pl.pallas_call(
        _proj_kernel,
        out_shape=(jax.ShapeDtypeStruct((Rp, Dp), jnp.float32),
                   jax.ShapeDtypeStruct((Rp, G), jnp.float32)),
        grid_spec=pltpu.PrefetchScalarGridSpec(
            num_scalar_prefetch=0,
            grid=(Rp // RT,),
            in_specs=[pl.BlockSpec((RT, Dp), lambda r: (r, 0)),
                      pl.BlockSpec((Dp, G), lambda r: (0, 0)),
                      pl.BlockSpec((1, G), lambda r: (0, 0))],
            out_specs=[pl.BlockSpec((RT, Dp), lambda r: (r, 0)),
                       pl.BlockSpec((RT, G), lambda r: (r, 0))]),
        compiler_params=pltpu.CompilerParams(dimension_semantics=("parallel",)),
    )(emb2d, w_ih, b_all)

    gates = gates2d.reshape(Tp, Bp, G)            # leading-dim split: no data movement

    # ---- kernel 2: bidirectional recurrence ----
    NT = Tp // TT
    out_tm, hn = pl.pallas_call(
        _lstm_kernel,
        out_shape=(jax.ShapeDtypeStruct((2 * Tp, Bp, Hp), jnp.float32),
                   jax.ShapeDtypeStruct((2 * Bp, Hp), jnp.float32)),
        grid_spec=pltpu.PrefetchScalarGridSpec(
            num_scalar_prefetch=0,
            grid=(2, NT),
            in_specs=[
                pl.BlockSpec((Bp, 1), lambda d, t: (0, 0)),
                # fwd reads time tiles 0..NT-1, bwd reads them reversed; last-dim block
                # index d picks the forward/backward half of the precomputed gates.
                pl.BlockSpec((TT, Bp, 4 * Hp),
                             lambda d, t: (t + d * (NT - 1 - 2 * t), 0, d)),
                pl.BlockSpec((Hp, 4 * Hp), lambda d, t: (d, 0)),
            ],
            out_specs=[
                pl.BlockSpec((TT, Bp, Hp),
                             lambda d, t: (d * NT + t + d * (NT - 1 - 2 * t), 0, 0)),
                pl.BlockSpec((Bp, Hp), lambda d, t: (d, 0)),
            ],
            scratch_shapes=[pltpu.VMEM((Bp, Hp), jnp.float32),
                            pltpu.VMEM((Bp, Hp), jnp.float32)]),
        compiler_params=pltpu.CompilerParams(
            dimension_semantics=("parallel", "arbitrary")),
    )(lens, gates, w_hh)

    # slice off padding, restore batch-first layout (matches nn.LSTM(batch_first=True))
    words = words2d.reshape(Tp, Bp, Dp)[:T, :B, :D].transpose(1, 0, 2)        # (B,T,D)
    out_f = out_tm[:Tp][:T, :B, :H]
    out_b = out_tm[Tp:][:T, :B, :H]
    output_embedding = jnp.concatenate([out_f, out_b], -1).transpose(1, 0, 2)  # (B,T,2H)
    question_embedding = jnp.concatenate([hn[:B, :H], hn[Bp:Bp + B, :H]], -1)  # (B,2H)
    return question_embedding, words, output_embedding


# --------------------------------------------------------------------------- params / ref
def init_params(key, vocab_size, wordvec_dim, rnn_dim, bidirectional=True):
    assert bidirectional
    H = rnn_dim // 2
    keys = jax.random.split(key, 9)
    s = 1.0 / float(jnp.sqrt(jnp.float32(H)))

    def u(k, shape):
        return jax.random.uniform(k, shape, jnp.float32, -s, s)

    return {
        "embed": jax.random.normal(keys[0], (vocab_size, wordvec_dim), jnp.float32),
        # nn.LSTM weight_ih_l0 is (4H, D) -> stored pre-transposed (D, 4H); gates i,f,g,o
        "wih_f": u(keys[1], (wordvec_dim, 4 * H)),
        "whh_f": u(keys[2], (H, 4 * H)),
        "b_f":   u(keys[3], (1, 4 * H)) + u(keys[4], (1, 4 * H)),   # bias_ih + bias_hh
        "wih_b": u(keys[5], (wordvec_dim, 4 * H)),
        "whh_b": u(keys[6], (H, 4 * H)),
        "b_b":   u(keys[7], (1, 4 * H)) + u(keys[8], (1, 4 * H)),
    }


def _reference(params, questions, question_len):
    """Pure-JAX reference of the same forward pass (packed-sequence semantics)."""
    words = jnp.tanh(jnp.take(params["embed"], questions, axis=0))   # (B,T,D)
    B, T, _ = words.shape
    H = params["wih_f"].shape[1] // 4

    def run(wih, whh, b, reverse):
        h = jnp.zeros((B, H), jnp.float32)
        c = jnp.zeros((B, H), jnp.float32)
        outs = [None] * T
        order = range(T - 1, -1, -1) if reverse else range(T)
        for t in order:
            gates = words[:, t] @ wih + h @ whh + b
            i = jax.nn.sigmoid(gates[:, 0 * H:1 * H])
            f = jax.nn.sigmoid(gates[:, 1 * H:2 * H])
            g = jnp.tanh(gates[:, 2 * H:3 * H])
            o = jax.nn.sigmoid(gates[:, 3 * H:4 * H])
            c_new = f * c + i * g
            h_new = o * jnp.tanh(c_new)
            m = (question_len > t)[:, None]
            h = jnp.where(m, h_new, h)
            c = jnp.where(m, c_new, c)
            outs[t] = jnp.where(m, h_new, 0.0)
        return jnp.stack(outs, axis=1), h

    of, hf = run(params["wih_f"], params["whh_f"], params["b_f"], False)
    ob, hb = run(params["wih_b"], params["whh_b"], params["b_b"], True)
    return (jnp.concatenate([hf, hb], -1), words, jnp.concatenate([of, ob], -1))


if __name__ == "__main__":
    vocab_size, wordvec_dim, rnn_dim = 50, 32, 32   # bidirectional -> H = 16 per direction
    B, T = 2, 8

    key = jax.random.PRNGKey(0)
    pkey, qkey = jax.random.split(key)
    params = init_params(pkey, vocab_size, wordvec_dim, rnn_dim)

    questions = jax.random.randint(qkey, (B, T), 0, vocab_size, dtype=jnp.int32)
    question_len = jnp.array([T, 5], dtype=jnp.int32)

    q_emb, words, out_emb = input_unit_linguistic(params, questions, question_len)
    jax.block_until_ready((q_emb, words, out_emb))

    # pad_packed_sequence pads only up to max(question_len)
    max_len = int(jnp.max(question_len))
    out_emb_trim = out_emb[:, :max_len]

    assert q_emb.shape == (B, rnn_dim)
    assert words.shape == (B, T, wordvec_dim)
    assert out_emb_trim.shape == (B, max_len, rnn_dim)

    # numerical sanity check against a pure-JAX reference
    q_ref, w_ref, o_ref = _reference(params, questions, question_len)
    assert jnp.allclose(q_emb, q_ref, atol=2e-3, rtol=2e-3)
    assert jnp.allclose(words, w_ref, atol=2e-3, rtol=2e-3)
    assert jnp.allclose(out_emb, o_ref, atol=2e-3, rtol=2e-3)

    print("KERNEL_OK")
</pallas_src>

<mosaic_0001>
module attributes {stable_mosaic.version = 11 : i64} {
  func.func @_proj_kernel(%arg0: i32, %arg1: memref<64x128xf32, #tpu.memory_space<vmem>>, %arg2: memref<128x1024xf32, #tpu.memory_space<vmem>>, %arg3: memref<1x1024xf32, #tpu.memory_space<vmem>>, %arg4: memref<64x128xf32, #tpu.memory_space<vmem>>, %arg5: memref<64x1024xf32, #tpu.memory_space<vmem>>) attributes {dimension_semantics = [#tpu.dimension_semantics<parallel>], iteration_bounds = array<i64: 1>, scalar_prefetch = 0 : i64, scratch_operands = 0 : i64, tpu.core_type = #tpu.core_type<tc>, window_params = [{transform_indices = @transform_0, window_bounds = array<i64: 64, 128>}, {pipeline_mode = #tpu.pipeline_mode<synchronous>, transform_indices = @transform_1, window_bounds = array<i64: 128, 1024>}, {pipeline_mode = #tpu.pipeline_mode<synchronous>, transform_indices = @transform_2, window_bounds = array<i64: 1, 1024>}, {transform_indices = @transform_3, window_bounds = array<i64: 64, 128>}, {transform_indices = @transform_4, window_bounds = array<i64: 64, 1024>}]} {
    %c0 = arith.constant 0 : index
    %c0_0 = arith.constant 0 : index
    %0 = vector.load %arg1[%c0, %c0_0] : memref<64x128xf32, #tpu.memory_space<vmem>>, vector<64x128xf32>
    %1 = math.tanh %0 : vector<64x128xf32>
    %c0_1 = arith.constant 0 : index
    %c0_2 = arith.constant 0 : index
    %2 = vector.load %arg4[%c0_1, %c0_2] : memref<64x128xf32, #tpu.memory_space<vmem>>, vector<64x128xf32>
    tpu.vector_store %arg4[%c0_1, %c0_2], %1 {strides = array<i32>} : memref<64x128xf32, #tpu.memory_space<vmem>>, vector<64x128xf32>,
    %c0_3 = arith.constant 0 : index
    %c0_4 = arith.constant 0 : index
    %3 = vector.load %arg2[%c0_3, %c0_4] : memref<128x1024xf32, #tpu.memory_space<vmem>>, vector<128x1024xf32>
    %cst = arith.constant dense<0.000000e+00> : vector<64x1024xf32>
    %4 = tpu.matmul %1, %3, %cst {dimension_numbers = #tpu.dot_dimension_numbers<[1], [0], [0], [1], [0, 0, 1, 1], [], []>} : vector<64x128xf32>, vector<128x1024xf32>, vector<64x1024xf32> -> vector<64x1024xf32>
    %c0_5 = arith.constant 0 : index
    %c0_6 = arith.constant 0 : index
    %5 = vector.load %arg3[%c0_5, %c0_6] : memref<1x1024xf32, #tpu.memory_space<vmem>>, vector<1x1024xf32>
    %6 = vector.broadcast %5 : vector<1x1024xf32> to vector<64x1024xf32>
    %7 = arith.addf %4, %6 : vector<64x1024xf32>
    %c0_7 = arith.constant 0 : index
    %c0_8 = arith.constant 0 : index
    %8 = vector.load %arg5[%c0_7, %c0_8] : memref<64x1024xf32, #tpu.memory_space<vmem>>, vector<64x1024xf32>
    tpu.vector_store %arg5[%c0_7, %c0_8], %7 {strides = array<i32>} : memref<64x1024xf32, #tpu.memory_space<vmem>>, vector<64x1024xf32>,
    return
  }
  func.func @transform_0(%arg0: i32) -> (i32, i32) {
    %c0_i32 = arith.constant 0 : i32
    %c0_i32_0 = arith.constant 0 : i32
    return %arg0, %c0_i32 : i32, i32
  }
  func.func @transform_1(%arg0: i32) -> (i32, i32) {
    %c0_i32 = arith.constant 0 : i32
    %c0_i32_0 = arith.constant 0 : i32
    %c0_i32_1 = arith.constant 0 : i32
    return %c0_i32, %c0_i32_0 : i32, i32
  }
  func.func @transform_2(%arg0: i32) -> (i32, i32) {
    %c0_i32 = arith.constant 0 : i32
    %c0_i32_0 = arith.constant 0 : i32
    %c0_i32_1 = arith.constant 0 : i32
    return %c0_i32, %c0_i32_0 : i32, i32
  }
  func.func @transform_3(%arg0: i32) -> (i32, i32) {
    %c0_i32 = arith.constant 0 : i32
    %c0_i32_0 = arith.constant 0 : i32
    return %arg0, %c0_i32 : i32, i32
  }
  func.func @transform_4(%arg0: i32) -> (i32, i32) {
    %c0_i32 = arith.constant 0 : i32
    %c0_i32_0 = arith.constant 0 : i32
    return %arg0, %c0_i32 : i32, i32
  }
}

</mosaic_0001>

<llo_original>
// kernel: tpu_custom_call.1
$region0: #{tpu_custom_call.1}
  #allocation0 [shape = 'u32[]', space=smem, size = 0x4, offset = 0x4, fixed_abs, tag = 'smem constant byte address 0x4 - core index']
  #allocation1 [shape = 'u32[144,128]{1,0:T(1,128)}', space=vmem, size = 0x12000, scoped, tag = 'internal scratch']
  %s0 = inlined_call_operand.hbm [shape: f32[64,128], index: 0, kind: input, shape index: {}]
  %s1 = inlined_call_operand.hbm [shape: f32[128,1024], index: 1, kind: input, shape index: {}]
  %s2 = inlined_call_operand.hbm [shape: f32[1,1024], index: 2, kind: input, shape index: {}]
  %s3 = inlined_call_operand.hbm [shape: f32[64,128], index: 3, kind: output, shape index: {0}]
  %s4 = inlined_call_operand.hbm [shape: f32[64,1024], index: 4, kind: output, shape index: {1}]
  %5 = xla_tuple %s3, %s4
  %s6 = sld [smem:[#allocation0]]
  $region42: #{tpu_custom_call.1} parent=0
    _
  %s8 = ssub.s32 1, %s6
  %s9 = scalar_select 0, %s8, %s6
  $region1: #{tpu_custom_call.1} parent=0
    #allocation2 [shape = 'u8[32768]{0}', space=vmem, size = 0x8000, scoped, tag = 'input window, operand 0, single buffered']
    #allocation3 [shape = 's32[1]{0}', space=sflag, size = 0x4, scoped, tag = 'scoped memory for tpu_custom_call.1']
    #allocation4 [shape = 's32[1]{0}', space=sflag, size = 0x4, scoped, tag = 'scoped memory for tpu_custom_call.1']
    #allocation5 [shape = 'u8[524288]{0}', space=vmem, size = 0x80000, scoped, tag = 'input window, operand 1, single buffered']
    #allocation6 [shape = 's32[1]{0}', space=sflag, size = 0x4, scoped, tag = 'scoped memory for tpu_custom_call.1']
    #allocation7 [shape = 'u8[4096]{0}', space=vmem, size = 0x1000, scoped, tag = 'input window, operand 2, single buffered']
    #allocation8 [shape = 'u8[32768]{0}', space=vmem, size = 0x8000, scoped, tag = 'output window, operand 0, single buffered']
    #allocation9 [shape = 'u8[262144]{0}', space=vmem, size = 0x40000, scoped, tag = 'output window, operand 1, single buffered']
    #allocation10 [shape = 's32[1]{0}', space=sflag, size = 0x4, scoped, tag = 'scoped memory for tpu_custom_call.1']
    %10 = vsyncpa [#allocation3], 0
    %11 = vsyncpa [#allocation6], 0
    %12 = vsyncpa [#allocation4], 0
    %13 = vsyncpa [#allocation10], 0
    // Predicated region
    $region2: #{tpu_custom_call.1} parent=1 // pred_check
      _
    $region3: #{tpu_custom_call.1} parent=1 // pred_check_branch
      %15 = sbr.rel (0) target = $region5
    $region4: #{tpu_custom_call.1} parent=1 // pred_region
      %s17 = ssub.s32 1024, 1024
      %18 = vsyncadd [#allocation3], %s17
      %s19 = sshll.u32 [#allocation2], 4
      %s20 = int_to_ptr.vmem [resolvable:$true] %s19
      %25 = dma.hbm_to_vmem [thread:$0]  %s0, 1024, %s20, [#allocation3], 128, 128, 8
    $region5: #{tpu_custom_call.1} parent=1 // pred_fallthru
      _
    // Predicated region
    $region6: #{tpu_custom_call.1} parent=1 // pred_check
      _
    $region7: #{tpu_custom_call.1} parent=1 // pred_check_branch
      %27 = sbr.rel (0) target = $region9
    $region8: #{tpu_custom_call.1} parent=1 // pred_region
      %s29 = ssub.s32 16384, 16384
      %30 = vsyncadd [#allocation6], %s29
      %s31 = sshll.u32 [#allocation5], 4
      %s32 = int_to_ptr.vmem [resolvable:$true] %s31
      %37 = dma.hbm_to_vmem [thread:$0]  %s1, 16384, %s32, [#allocation6], 1024, 1024, 64
    $region9: #{tpu_custom_call.1} parent=1 // pred_fallthru
      _
    // Predicated region
    $region10: #{tpu_custom_call.1} parent=1 // pred_check
      _
    $region11: #{tpu_custom_call.1} parent=1 // pred_check_branch
      %39 = sbr.rel (0) target = $region13
    $region12: #{tpu_custom_call.1} parent=1 // pred_region
      %s41 = ssub.s32 128, 128
      %42 = vsyncadd [#allocation6], %s41
      %s44 = sshll.u32 [#allocation7], 4
      %s45 = int_to_ptr.vmem [resolvable:$true] %s44
      %47 = dma.hbm_to_vmem [thread:$0]  %s2, 128, %s45, [#allocation6]
    $region13: #{tpu_custom_call.1} parent=1 // pred_fallthru
      _
    // Predicated region
    $region14: #{tpu_custom_call.1} parent=1 // pred_check
      _
    $region15: #{tpu_custom_call.1} parent=1 // pred_check_branch
      %49 = sbr.rel (0) target = $region17
    $region16: #{tpu_custom_call.1} parent=1 // pred_region
      %50 = dma.done [#allocation3], 1024
    $region17: #{tpu_custom_call.1} parent=1 // pred_fallthru
      _
    // Predicated region
    $region18: #{tpu_custom_call.1} parent=1 // pred_check
      _
    $region19: #{tpu_custom_call.1} parent=1 // pred_check_branch
      %52 = sbr.rel (0) target = $region21
    $region20: #{tpu_custom_call.1} parent=1 // pred_region
      %53 = dma.done [#allocation6], 16384
    $region21: #{tpu_custom_call.1} parent=1 // pred_fallthru
      _
    // Predicated region
    $region22: #{tpu_custom_call.1} parent=1 // pred_check
      _
    $region23: #{tpu_custom_call.1} parent=1 // pred_check_branch
      %55 = sbr.rel (0) target = $region25
    $region24: #{tpu_custom_call.1} parent=1 // pred_region
      %56 = dma.done [#allocation6], 128
    $region25: #{tpu_custom_call.1} parent=1 // pred_fallthru
      _
    %v57 = vld [vmem:[#allocation2] sm:$0xff]
    %v58 = vld [vmem:[#allocation2 + $0x8] sm:$0xff]
    %v59 = vld [vmem:[#allocation2 + $0x10] sm:$0xff]
    %v60 = vld [vmem:[#allocation2 + $0x18] sm:$0xff]
    %v61 = vld [vmem:[#allocation2 + $0x20] sm:$0xff]
    %v62 = vld [vmem:[#allocation2 + $0x28] sm:$0xff]
    %v63 = vld [vmem:[#allocation2 + $0x30] sm:$0xff]
    %v64 = vld [vmem:[#allocation2 + $0x38] sm:$0xff]
    %v65 = vtanh.pop %v57
    %v66 = vtanh.pop %v58
    %v67 = vtanh.pop %v59
    %v68 = vtanh.pop %v60
    %v69 = vtanh.pop %v61
    %v70 = vtanh.pop %v62
    %v71 = vtanh.pop %v63
    %v72 = vtanh.pop %v64
    %73 = vst [vmem:[#allocation8] sm:$0xff] %v65
    %74 = vst [vmem:[#allocation8 + $0x8] sm:$0xff] %v66
    %75 = vst [vmem:[#allocation8 + $0x10] sm:$0xff] %v67
    %76 = vst [vmem:[#allocation8 + $0x18] sm:$0xff] %v68
    %77 = vst [vmem:[#allocation8 + $0x20] sm:$0xff] %v69
    %78 = vst [vmem:[#allocation8 + $0x28] sm:$0xff] %v70
    %79 = vst [vmem:[#allocation8 + $0x30] sm:$0xff] %v71
    %80 = vst [vmem:[#allocation8 + $0x38] sm:$0xff] %v72
    %v81 = vld [vmem:[#allocation5] sm:$0xff]
    %v82 = vld [vmem:[#allocation5 + $0x8] sm:$0xff]
    %v83 = vld [vmem:[#allocation5 + $0x10] sm:$0xff]
    %v84 = vld [vmem:[#allocation5 + $0x18] sm:$0xff]
    %v85 = vld [vmem:[#allocation5 + $0x20] sm:$0xff]
    %v86 = vld [vmem:[#allocation5 + $0x28] sm:$0xff]
    %v87 = vld [vmem:[#allocation5 + $0x30] sm:$0xff]
    %v88 = vld [vmem:[#allocation5 + $0x38] sm:$0xff]
    %v89 = vld [vmem:[#allocation5 + $0x40] sm:$0xff]
    %v90 = vld [vmem:[#allocation5 + $0x48] sm:$0xff]
    %v91 = vld [vmem:[#allocation5 + $0x50] sm:$0xff]
    %v92 = vld [vmem:[#allocation5 + $0x58] sm:$0xff]
    %v93 = vld [vmem:[#allocation5 + $0x60] sm:$0xff]
    %v94 = vld [vmem:[#allocation5 + $0x68] sm:$0xff]
    %v95 = vld [vmem:[#allocation5 + $0x70] sm:$0xff]
    %v96 = vld [vmem:[#allocation5 + $0x78] sm:$0xff]
    %v97 = vld [vmem:[#allocation5 + $0x80] sm:$0xff]
    %v98 = vld [vmem:[#allocation5 + $0x88] sm:$0xff]
    %v99 = vld [vmem:[#allocation5 + $0x90] sm:$0xff]
    %v100 = vld [vmem:[#allocation5 + $0x98] sm:$0xff]
    %v101 = vld [vmem:[#allocation5 + $0xa0] sm:$0xff]
    %v102 = vld [vmem:[#allocation5 + $0xa8] sm:$0xff]
    %v103 = vld [vmem:[#allocation5 + $0xb0] sm:$0xff]
    %v104 = vld [vmem:[#allocation5 + $0xb8] sm:$0xff]
    %v105 = vld [vmem:[#allocation5 + $0xc0] sm:$0xff]
    %v106 = vld [vmem:[#allocation5 + $0xc8] sm:$0xff]
    %v107 = vld [vmem:[#allocation5 + $0xd0] sm:$0xff]
    %v108 = vld [vmem:[#allocation5 + $0xd8] sm:$0xff]
    %v109 = vld [vmem:[#allocation5 + $0xe0] sm:$0xff]
    %v110 = vld [vmem:[#allocation5 + $0xe8] sm:$0xff]
    %v111 = vld [vmem:[#allocation5 + $0xf0] sm:$0xff]
    %v112 = vld [vmem:[#allocation5 + $0xf8] sm:$0xff]
    %v113 = vld [vmem:[#allocation5 + $0x100] sm:$0xff]
    %v114 = vld [vmem:[#allocation5 + $0x108] sm:$0xff]
    %v115 = vld [vmem:[#allocation5 + $0x110] sm:$0xff]
    %v116 = vld [vmem:[#allocation5 + $0x118] sm:$0xff]
    %v117 = vld [vmem:[#allocation5 + $0x120] sm:$0xff]
    %v118 = vld [vmem:[#allocation5 + $0x128] sm:$0xff]
    %v119 = vld [vmem:[#allocation5 + $0x130] sm:$0xff]
    %v120 = vld [vmem:[#allocation5 + $0x138] sm:$0xff]
    %v121 = vld [vmem:[#allocation5 + $0x140] sm:$0xff]
    %v122 = vld [vmem:[#allocation5 + $0x148] sm:$0xff]
    %v123 = vld [vmem:[#allocation5 + $0x150] sm:$0xff]
    %v124 = vld [vmem:[#allocation5 + $0x158] sm:$0xff]
    %v125 = vld [vmem:[#allocation5 + $0x160] sm:$0xff]
    %v126 = vld [vmem:[#allocation5 + $0x168] sm:$0xff]
    %v127 = vld [vmem:[#allocation5 + $0x170] sm:$0xff]
    %v128 = vld [vmem:[#allocation5 + $0x178] sm:$0xff]
    %v129 = vld [vmem:[#allocation5 + $0x180] sm:$0xff]
    %v130 = vld [vmem:[#allocation5 + $0x188] sm:$0xff]
    %v131 = vld [vmem:[#allocation5 + $0x190] sm:$0xff]
    %v132 = vld [vmem:[#allocation5 + $0x198] sm:$0xff]
    %v133 = vld [vmem:[#allocation5 + $0x1a0] sm:$0xff]
    %v134 = vld [vmem:[#allocation5 + $0x1a8] sm:$0xff]
    %v135 = vld [vmem:[#allocation5 + $0x1b0] sm:$0xff]
    %v136 = vld [vmem:[#allocation5 + $0x1b8] sm:$0xff]
    %v137 = vld [vmem:[#allocation5 + $0x1c0] sm:$0xff]
    %v138 = vld [vmem:[#allocation5 + $0x1c8] sm:$0xff]
    %v139 = vld [vmem:[#allocation5 + $0x1d0] sm:$0xff]
    %v140 = vld [vmem:[#allocation5 + $0x1d8] sm:$0xff]
    %v141 = vld [vmem:[#allocation5 + $0x1e0] sm:$0xff]
    %v142 = vld [vmem:[#allocation5 + $0x1e8] sm:$0xff]
    %v143 = vld [vmem:[#allocation5 + $0x1f0] sm:$0xff]
    %v144 = vld [vmem:[#allocation5 + $0x1f8] sm:$0xff]
    %v145 = vld [vmem:[#allocation5 + $0x200] sm:$0xff]
    %v146 = vld [vmem:[#allocation5 + $0x208] sm:$0xff]
    %v147 = vld [vmem:[#allocation5 + $0x210] sm:$0xff]
    %v148 = vld [vmem:[#allocation5 + $0x218] sm:$0xff]
    %v149 = vld [vmem:[#allocation5 + $0x220] sm:$0xff]
    %v150 = vld [vmem:[#allocation5 + $0x228] sm:$0xff]
    %v151 = vld [vmem:[#allocation5 + $0x230] sm:$0xff]
    %v152 = vld [vmem:[#allocation5 + $0x238] sm:$0xff]
    %v153 = vld [vmem:[#allocation5 + $0x240] sm:$0xff]
    %v154 = vld [vmem:[#allocation5 + $0x248] sm:$0xff]
    %v155 = vld [vmem:[#allocation5 + $0x250] sm:$0xff]
    %v156 = vld [vmem:[#allocation5 + $0x258] sm:$0xff]
    %v157 = vld [vmem:[#allocation5 + $0x260] sm:$0xff]
    %v158 = vld [vmem:[#allocation5 + $0x268] sm:$0xff]
    %v159 = vld [vmem:[#allocation5 + $0x270] sm:$0xff]
    %v160 = vld [vmem:[#allocation5 + $0x278] sm:$0xff]
    %v161 = vld [vmem:[#allocation5 + $0x280] sm:$0xff]
    %v162 = vld [vmem:[#allocation5 + $0x288] sm:$0xff]
    %v163 = vld [vmem:[#allocation5 + $0x290] sm:$0xff]
    %v164 = vld [vmem:[#allocation5 + $0x298] sm:$0xff]
    %v165 = vld [vmem:[#allocation5 + $0x2a0] sm:$0xff]
    %v166 = vld [vmem:[#allocation5 + $0x2a8] sm:$0xff]
    %v167 = vld [vmem:[#allocation5 + $0x2b0] sm:$0xff]
    %v168 = vld [vmem:[#allocation5 + $0x2b8] sm:$0xff]
    %v169 = vld [vmem:[#allocation5 + $0x2c0] sm:$0xff]
    %v170 = vld [vmem:[#allocation5 + $0x2c8] sm:$0xff]
    %v171 = vld [vmem:[#allocation5 + $0x2d0] sm:$0xff]
    %v172 = vld [vmem:[#allocation5 + $0x2d8] sm:$0xff]
    %v173 = vld [vmem:[#allocation5 + $0x2e0] sm:$0xff]
    %v174 = vld [vmem:[#allocation5 + $0x2e8] sm:$0xff]
    %v175 = vld [vmem:[#allocation5 + $0x2f0] sm:$0xff]
    %v176 = vld [vmem:[#allocation5 + $0x2f8] sm:$0xff]
    %v177 = vld [vmem:[#allocation5 + $0x300] sm:$0xff]
    %v178 = vld [vmem:[#allocation5 + $0x308] sm:$0xff]
    %v179 = vld [vmem:[#allocation5 + $0x310] sm:$0xff]
    %v180 = vld [vmem:[#allocation5 + $0x318] sm:$0xff]
    %v181 = vld [vmem:[#allocation5 + $0x320] sm:$0xff]
    %v182 = vld [vmem:[#allocation5 + $0x328] sm:$0xff]
    %v183 = vld [vmem:[#allocation5 + $0x330] sm:$0xff]
    %v184 = vld [vmem:[#allocation5 + $0x338] sm:$0xff]
    %v185 = vld [vmem:[#allocation5 + $0x340] sm:$0xff]
    %v186 = vld [vmem:[#allocation5 + $0x348] sm:$0xff]
    %v187 = vld [vmem:[#allocation5 + $0x350] sm:$0xff]
    %v188 = vld [vmem:[#allocation5 + $0x358] sm:$0xff]
    %v189 = vld [vmem:[#allocation5 + $0x360] sm:$0xff]
    %v190 = vld [vmem:[#allocation5 + $0x368] sm:$0xff]
    %v191 = vld [vmem:[#allocation5 + $0x370] sm:$0xff]
    %v192 = vld [vmem:[#allocation5 + $0x378] sm:$0xff]
    %v193 = vld [vmem:[#allocation5 + $0x380] sm:$0xff]
    %v194 = vld [vmem:[#allocation5 + $0x388] sm:$0xff]
    %v195 = vld [vmem:[#allocation5 + $0x390] sm:$0xff]
    %v196 = vld [vmem:[#allocation5 + $0x398] sm:$0xff]
    %v197 = vld [vmem:[#allocation5 + $0x3a0] sm:$0xff]
    %v198 = vld [vmem:[#allocation5 + $0x3a8] sm:$0xff]
    %v199 = vld [vmem:[#allocation5 + $0x3b0] sm:$0xff]
    %v200 = vld [vmem:[#allocation5 + $0x3b8] sm:$0xff]
    %v201 = vld [vmem:[#allocation5 + $0x3c0] sm:$0xff]
    %v202 = vld [vmem:[#allocation5 + $0x3c8] sm:$0xff]
    %v203 = vld [vmem:[#allocation5 + $0x3d0] sm:$0xff]
    %v204 = vld [vmem:[#allocation5 + $0x3d8] sm:$0xff]
    %v205 = vld [vmem:[#allocation5 + $0x3e0] sm:$0xff]
    %v206 = vld [vmem:[#allocation5 + $0x3e8] sm:$0xff]
    %v207 = vld [vmem:[#allocation5 + $0x3f0] sm:$0xff]
    %v208 = vld [vmem:[#allocation5 + $0x3f8] sm:$0xff]
    %v209 = vld [vmem:[#allocation7] sm:$0xff]
    %v211 = vlaneseq
    %v212 = vshrl.u32 %v211, 7
    %v213 = vsub.s32 0, %v212
    %v214 = vrot.slane %v209, %v213
    %v215 = vlaneseq
    %v216 = vshrl.u32 %v215, 7
    %v217 = vsub.s32 1, %v216
    %v218 = vrot.slane %v209, %v217
    %v219 = vlaneseq
    %v220 = vshrl.u32 %v219, 7
    %v221 = vsub.s32 2, %v220
    %v222 = vrot.slane %v209, %v221
    %v223 = vlaneseq
    %v224 = vshrl.u32 %v223, 7
    %v225 = vsub.s32 3, %v224
    %v226 = vrot.slane %v209, %v225
    %v227 = vlaneseq
    %v228 = vshrl.u32 %v227, 7
    %v229 = vsub.s32 4, %v228
    %v230 = vrot.slane %v209, %v229
    %v231 = vlaneseq
    %v232 = vshrl.u32 %v231, 7
    %v233 = vsub.s32 5, %v232
    %v234 = vrot.slane %v209, %v233
    %v235 = vlaneseq
    %v236 = vshrl.u32 %v235, 7
    %v237 = vsub.s32 6, %v236
    %v238 = vrot.slane %v209, %v237
    %v239 = vlaneseq
    %v240 = vshrl.u32 %v239, 7
    %v241 = vsub.s32 7, %v240
    %v242 = vrot.slane %v209, %v241
    %251 = vmatprep.subr.mxu0 %v82
    %252 = vmatpush1.msra.mxu0 %v81
    %253 = vmatprep.subr.mxu0 %v90
    %254 = vmatpush1.msra.mxu0 %v89
    %255 = vmatprep.subr.mxu0 %v98
    %256 = vmatpush1.msra.mxu0 %v97
    %257 = vmatprep.subr.mxu0 %v106
    %258 = vmatpush1.msra.mxu0 %v105
    %259 = vmatprep.subr.mxu0 %v114
    %260 = vmatpush1.msra.mxu0 %v113
    %261 = vmatprep.subr.mxu0 %v122
    %262 = vmatpush1.msra.mxu0 %v121
    %263 = vmatprep.subr.mxu0 %v130
    %264 = vmatpush1.msra.mxu0 %v129
    %265 = vmatprep.subr.mxu0 %v138
    %266 = vmatpush1.msra.mxu0 %v137
    %267 = vmatprep.subr.mxu0 %v146
    %268 = vmatpush1.msra.mxu0 %v145
    %269 = vmatprep.subr.mxu0 %v154
    %270 = vmatpush1.msra.mxu0 %v153
    %271 = vmatprep.subr.mxu0 %v162
    %272 = vmatpush1.msra.mxu0 %v161
    %273 = vmatprep.subr.mxu0 %v170
    %274 = vmatpush1.msra.mxu0 %v169
    %275 = vmatprep.subr.mxu0 %v178
    %276 = vmatpush1.msra.mxu0 %v177
    %277 = vmatprep.subr.mxu0 %v186
    %278 = vmatpush1.msra.mxu0 %v185
    %279 = vmatprep.subr.mxu0 %v194
    %280 = vmatpush1.msra.mxu0 %v193
    %281 = vmatprep.subr.mxu0 %v202
    %282 = vmatpush1.msra.mxu0 %v201
    %283 = vmatprep.subr.mxu0 0.0
    %284 = vmatpush1.msra.mxu0 0.0
    %285 = vmatprep.subr.mxu0 0.0
    %286 = vmatpush1.msra.mxu0 0.0
    %287 = vmatprep.subr.mxu0 0.0
    %288 = vmatpush1.msra.mxu0 0.0
    %289 = vmatprep.subr.mxu0 0.0
    %290 = vmatpush1.msra.mxu0 0.0
    %291 = vmatprep.subr.mxu0 0.0
    %292 = vmatpush1.msra.mxu0 0.0
    %293 = vmatprep.subr.mxu0 0.0
    %294 = vmatpush1.msra.mxu0 0.0
    %295 = vmatprep.subr.mxu0 0.0
    %296 = vmatpush1.msra.mxu0 0.0
    %297 = vmatprep.subr.mxu0 0.0
    %298 = vmatpush1.msra.mxu0 0.0
    %299 = vmatprep.subr.mxu0 0.0
    %300 = vmatpush1.msra.mxu0 0.0
    %301 = vmatprep.subr.mxu0 0.0
    %302 = vmatpush1.msra.mxu0 0.0
    %303 = vmatprep.subr.mxu0 0.0
    %304 = vmatpush1.msra.mxu0 0.0
    %305 = vmatprep.subr.mxu0 0.0
    %306 = vmatpush1.msra.mxu0 0.0
    %307 = vmatprep.subr.mxu0 0.0
    %308 = vmatpush1.msra.mxu0 0.0
    %309 = vmatprep.subr.mxu0 0.0
    %310 = vmatpush1.msra.mxu0 0.0
    %311 = vmatprep.subr.mxu0 0.0
    %312 = vmatpush1.msra.mxu0 0.0
    %313 = vmatprep.subr.mxu0 0.0
    %314 = vmatpush1.msra.mxu0 0.0
    %315 = vmatprep.mubr.f32.mxu0 0.0
    %316 = vmatmul.mubr.f32.gmra.mrb[0].mxu0 %v65
    %v317 = vpop.f32.mrb[0].mxu0
    %v318 = vadd.f32 %v214, %v317
    %v319 = vpop.f32.mrb[0].mxu0
    %v320 = vadd.f32 %v218, %v319
    %321 = vmatprep.mubr.f32.mxu0 0.0
    %322 = vmatmul.mubr.f32.gmra.mrb[0].mxu0 %v66
    %v323 = vpop.f32.mrb[0].mxu0
    %v324 = vadd.f32 %v214, %v323
    %v325 = vpop.f32.mrb[0].mxu0
    %v326 = vadd.f32 %v218, %v325
    %327 = vmatprep.mubr.f32.mxu0 0.0
    %328 = vmatmul.mubr.f32.gmra.mrb[0].mxu0 %v67
    %v329 = vpop.f32.mrb[0].mxu0
    %v330 = vadd.f32 %v214, %v329
    %v331 = vpop.f32.mrb[0].mxu0
    %v332 = vadd.f32 %v218, %v331
    %333 = vmatprep.mubr.f32.mxu0 0.0
    %334 = vmatmul.mubr.f32.gmra.mrb[0].mxu0 %v68
    %v335 = vpop.f32.mrb[0].mxu0
    %v336 = vadd.f32 %v214, %v335
    %v337 = vpop.f32.mrb[0].mxu0
    %v338 = vadd.f32 %v218, %v337
    %339 = vmatprep.mubr.f32.mxu0 0.0
    %340 = vmatmul.mubr.f32.gmra.mrb[0].mxu0 %v69
    %v341 = vpop.f32.mrb[0].mxu0
    %v342 = vadd.f32 %v214, %v341
    %v343 = vpop.f32.mrb[0].mxu0
    %v344 = vadd.f32 %v218, %v343
    %345 = vmatprep.mubr.f32.mxu0 0.0
    %346 = vmatmul.mubr.f32.gmra.mrb[0].mxu0 %v70
    %v347 = vpop.f32.mrb[0].mxu0
    %v348 = vadd.f32 %v214, %v347
    %v349 = vpop.f32.mrb[0].mxu0
    %v350 = vadd.f32 %v218, %v349
    %351 = vmatprep.mubr.f32.mxu0 0.0
    %352 = vmatmul.mubr.f32.gmra.mrb[0].mxu0 %v71
    %v353 = vpop.f32.mrb[0].mxu0
    %v354 = vadd.f32 %v214, %v353
    %v355 = vpop.f32.mrb[0].mxu0
    %v356 = vadd.f32 %v218, %v355
    %357 = vmatprep.mubr.f32.mxu0 0.0
    %358 = vmatmul.mubr.f32.gmra.mrb[0].mxu0 %v72
    %v359 = vpop.f32.mrb[0].mxu0
    %v360 = vadd.f32 %v214, %v359
    %v361 = vpop.f32.mrb[0].mxu0
    %v362 = vadd.f32 %v218, %v361
    %363 = vdwg.mxu0
    %364 = vmatprep.subr.mxu0 %v84
    %365 = vmatpush1.msra.mxu0 %v83
    %366 = vmatprep.subr.mxu0 %v92
    %367 = vmatpush1.msra.mxu0 %v91
    %368 = vmatprep.subr.mxu0 %v100
    %369 = vmatpush1.msra.mxu0 %v99
    %370 = vmatprep.subr.mxu0 %v108
    %371 = vmatpush1.msra.mxu0 %v107
    %372 = vmatprep.subr.mxu0 %v116
    %373 = vmatpush1.msra.mxu0 %v115
    %374 = vmatprep.subr.mxu0 %v124
    %375 = vmatpush1.msra.mxu0 %v123
    %376 = vmatprep.subr.mxu0 %v132
    %377 = vmatpush1.msra.mxu0 %v131
    %378 = vmatprep.subr.mxu0 %v140
    %379 = vmatpush1.msra.mxu0 %v139
    %380 = vmatprep.subr.mxu0 %v148
    %381 = vmatpush1.msra.mxu0 %v147
    %382 = vmatprep.subr.mxu0 %v156
    %383 = vmatpush1.msra.mxu0 %v155
    %384 = vmatprep.subr.mxu0 %v164
    %385 = vmatpush1.msra.mxu0 %v163
    %386 = vmatprep.subr.mxu0 %v172
    %387 = vmatpush1.msra.mxu0 %v171
    %388 = vmatprep.subr.mxu0 %v180
    %389 = vmatpush1.msra.mxu0 %v179
    %390 = vmatprep.subr.mxu0 %v188
    %391 = vmatpush1.msra.mxu0 %v187
    %392 = vmatprep.subr.mxu0 %v196
    %393 = vmatpush1.msra.mxu0 %v195
    %394 = vmatprep.subr.mxu0 %v204
    %395 = vmatpush1.msra.mxu0 %v203
    %396 = vmatprep.subr.mxu0 0.0
    %397 = vmatpush1.msra.mxu0 0.0
    %398 = vmatprep.subr.mxu0 0.0
    %399 = vmatpush1.msra.mxu0 0.0
    %400 = vmatprep.subr.mxu0 0.0
    %401 = vmatpush1.msra.mxu0 0.0
    %402 = vmatprep.subr.mxu0 0.0
    %403 = vmatpush1.msra.mxu0 0.0
    %404 = vmatprep.subr.mxu0 0.0
    %405 = vmatpush1.msra.mxu0 0.0
    %406 = vmatprep.subr.mxu0 0.0
    %407 = vmatpush1.msra.mxu0 0.0
    %408 = vmatprep.subr.mxu0 0.0
    %409 = vmatpush1.msra.mxu0 0.0
    %410 = vmatprep.subr.mxu0 0.0
    %411 = vmatpush1.msra.mxu0 0.0
    %412 = vmatprep.subr.mxu0 0.0
    %413 = vmatpush1.msra.mxu0 0.0
    %414 = vmatprep.subr.mxu0 0.0
    %415 = vmatpush1.msra.mxu0 0.0
    %416 = vmatprep.subr.mxu0 0.0
    %417 = vmatpush1.msra.mxu0 0.0
    %418 = vmatprep.subr.mxu0 0.0
    %419 = vmatpush1.msra.mxu0 0.0
    %420 = vmatprep.subr.mxu0 0.0
    %421 = vmatpush1.msra.mxu0 0.0
    %422 = vmatprep.subr.mxu0 0.0
    %423 = vmatpush1.msra.mxu0 0.0
    %424 = vmatprep.subr.mxu0 0.0
    %425 = vmatpush1.msra.mxu0 0.0
    %426 = vmatprep.subr.mxu0 0.0
    %427 = vmatpush1.msra.mxu0 0.0
    %428 = vmatprep.mubr.f32.mxu0 0.0
    %429 = vmatmul.mubr.f32.gmra.mrb[0].mxu0 %v65
    %v430 = vpop.f32.mrb[0].mxu0
    %v431 = vadd.f32 %v222, %v430
    %v432 = vpop.f32.mrb[0].mxu0
    %v433 = vadd.f32 %v226, %v432
    %434 = vmatprep.mubr.f32.mxu0 0.0
    %435 = vmatmul.mubr.f32.gmra.mrb[0].mxu0 %v66
    %v436 = vpop.f32.mrb[0].mxu0
    %v437 = vadd.f32 %v222, %v436
    %v438 = vpop.f32.mrb[0].mxu0
    %v439 = vadd.f32 %v226, %v438
    %440 = vmatprep.mubr.f32.mxu0 0.0
    %441 = vmatmul.mubr.f32.gmra.mrb[0].mxu0 %v67
    %v442 = vpop.f32.mrb[0].mxu0
    %v443 = vadd.f32 %v222, %v442
    %v444 = vpop.f32.mrb[0].mxu0
    %v445 = vadd.f32 %v226, %v444
    %446 = vmatprep.mubr.f32.mxu0 0.0
    %447 = vmatmul.mubr.f32.gmra.mrb[0].mxu0 %v68
    %v448 = vpop.f32.mrb[0].mxu0
    %v449 = vadd.f32 %v222, %v448
    %v450 = vpop.f32.mrb[0].mxu0
    %v451 = vadd.f32 %v226, %v450
    %452 = vmatprep.mubr.f32.mxu0 0.0
    %453 = vmatmul.mubr.f32.gmra.mrb[0].mxu0 %v69
    %v454 = vpop.f32.mrb[0].mxu0
    %v455 = vadd.f32 %v222, %v454
    %v456 = vpop.f32.mrb[0].mxu0
    %v457 = vadd.f32 %v226, %v456
    %458 = vmatprep.mubr.f32.mxu0 0.0
    %459 = vmatmul.mubr.f32.gmra.mrb[0].mxu0 %v70
    %v460 = vpop.f32.mrb[0].mxu0
    %v461 = vadd.f32 %v222, %v460
    %v462 = vpop.f32.mrb[0].mxu0
    %v463 = vadd.f32 %v226, %v462
    %464 = vmatprep.mubr.f32.mxu0 0.0
    %465 = vmatmul.mubr.f32.gmra.mrb[0].mxu0 %v71
    %v466 = vpop.f32.mrb[0].mxu0
    %v467 = vadd.f32 %v222, %v466
    %v468 = vpop.f32.mrb[0].mxu0
    %v469 = vadd.f32 %v226, %v468
    %470 = vmatprep.mubr.f32.mxu0 0.0
    %471 = vmatmul.mubr.f32.gmra.mrb[0].mxu0 %v72
    %v472 = vpop.f32.mrb[0].mxu0
    %v473 = vadd.f32 %v222, %v472
    %v474 = vpop.f32.mrb[0].mxu0
    %v475 = vadd.f32 %v226, %v474
    %476 = vdwg.mxu0
    %477 = vmatprep.subr.mxu0 %v86
    %478 = vmatpush1.msra.mxu0 %v85
    %479 = vmatprep.subr.mxu0 %v94
    %480 = vmatpush1.msra.mxu0 %v93
    %481 = vmatprep.subr.mxu0 %v102
    %482 = vmatpush1.msra.mxu0 %v101
    %483 = vmatprep.subr.mxu0 %v110
    %484 = vmatpush1.msra.mxu0 %v109
    %485 = vmatprep.subr.mxu0 %v118
    %486 = vmatpush1.msra.mxu0 %v117
    %487 = vmatprep.subr.mxu0 %v126
    %488 = vmatpush1.msra.mxu0 %v125
    %489 = vmatprep.subr.mxu0 %v134
    %490 = vmatpush1.msra.mxu0 %v133
    %491 = vmatprep.subr.mxu0 %v142
    %492 = vmatpush1.msra.mxu0 %v141
    %493 = vmatprep.subr.mxu0 %v150
    %494 = vmatpush1.msra.mxu0 %v149
    %495 = vmatprep.subr.mxu0 %v158
    %496 = vmatpush1.msra.mxu0 %v157
    %497 = vmatprep.subr.mxu0 %v166
    %498 = vmatpush1.msra.mxu0 %v165
    %499 = vmatprep.subr.mxu0 %v174
    %500 = vmatpush1.msra.mxu0 %v173
    %501 = vmatprep.subr.mxu0 %v182
    %502 = vmatpush1.msra.mxu0 %v181
    %503 = vmatprep.subr.mxu0 %v190
    %504 = vmatpush1.msra.mxu0 %v189
    %505 = vmatprep.subr.mxu0 %v198
    %506 = vmatpush1.msra.mxu0 %v197
    %507 = vmatprep.subr.mxu0 %v206
    %508 = vmatpush1.msra.mxu0 %v205
    %509 = vmatprep.subr.mxu0 0.0
    %510 = vmatpush1.msra.mxu0 0.0
    %511 = vmatprep.subr.mxu0 0.0
    %512 = vmatpush1.msra.mxu0 0.0
    %513 = vmatprep.subr.mxu0 0.0
    %514 = vmatpush1.msra.mxu0 0.0
    %515 = vmatprep.subr.mxu0 0.0
    %516 = vmatpush1.msra.mxu0 0.0
    %517 = vmatprep.subr.mxu0 0.0
    %518 = vmatpush1.msra.mxu0 0.0
    %519 = vmatprep.subr.mxu0 0.0
    %520 = vmatpush1.msra.mxu0 0.0
    %521 = vmatprep.subr.mxu0 0.0
    %522 = vmatpush1.msra.mxu0 0.0
    %523 = vmatprep.subr.mxu0 0.0
    %524 = vmatpush1.msra.mxu0 0.0
    %525 = vmatprep.subr.mxu0 0.0
    %526 = vmatpush1.msra.mxu0 0.0
    %527 = vmatprep.subr.mxu0 0.0
    %528 = vmatpush1.msra.mxu0 0.0
    %529 = vmatprep.subr.mxu0 0.0
    %530 = vmatpush1.msra.mxu0 0.0
    %531 = vmatprep.subr.mxu0 0.0
    %532 = vmatpush1.msra.mxu0 0.0
    %533 = vmatprep.subr.mxu0 0.0
    %534 = vmatpush1.msra.mxu0 0.0
    %535 = vmatprep.subr.mxu0 0.0
    %536 = vmatpush1.msra.mxu0 0.0
    %537 = vmatprep.subr.mxu0 0.0
    %538 = vmatpush1.msra.mxu0 0.0
    %539 = vmatprep.subr.mxu0 0.0
    %540 = vmatpush1.msra.mxu0 0.0
    %541 = vmatprep.mubr.f32.mxu0 0.0
    %542 = vmatmul.mubr.f32.gmra.mrb[0].mxu0 %v65
    %v543 = vpop.f32.mrb[0].mxu0
    %v544 = vadd.f32 %v230, %v543
    %v545 = vpop.f32.mrb[0].mxu0
    %v546 = vadd.f32 %v234, %v545
    %547 = vmatprep.mubr.f32.mxu0 0.0
    %548 = vmatmul.mubr.f32.gmra.mrb[0].mxu0 %v66
    %v549 = vpop.f32.mrb[0].mxu0
    %v550 = vadd.f32 %v230, %v549
    %v551 = vpop.f32.mrb[0].mxu0
    %v552 = vadd.f32 %v234, %v551
    %553 = vmatprep.mubr.f32.mxu0 0.0
    %554 = vmatmul.mubr.f32.gmra.mrb[0].mxu0 %v67
    %v555 = vpop.f32.mrb[0].mxu0
    %v556 = vadd.f32 %v230, %v555
    %v557 = vpop.f32.mrb[0].mxu0
    %v558 = vadd.f32 %v234, %v557
    %559 = vmatprep.mubr.f32.mxu0 0.0
    %560 = vmatmul.mubr.f32.gmra.mrb[0].mxu0 %v68
    %v561 = vpop.f32.mrb[0].mxu0
    %v562 = vadd.f32 %v230, %v561
    %v563 = vpop.f32.mrb[0].mxu0
    %v564 = vadd.f32 %v234, %v563
    %565 = vmatprep.mubr.f32.mxu0 0.0
    %566 = vmatmul.mubr.f32.gmra.mrb[0].mxu0 %v69
    %v567 = vpop.f32.mrb[0].mxu0
    %v568 = vadd.f32 %v230, %v567
    %v569 = vpop.f32.mrb[0].mxu0
    %v570 = vadd.f32 %v234, %v569
    %571 = vmatprep.mubr.f32.mxu0 0.0
    %572 = vmatmul.mubr.f32.gmra.mrb[0].mxu0 %v70
    %v573 = vpop.f32.mrb[0].mxu0
    %v574 = vadd.f32 %v230, %v573
    %v575 = vpop.f32.mrb[0].mxu0
    %v576 = vadd.f32 %v234, %v575
    %577 = vmatprep.mubr.f32.mxu0 0.0
    %578 = vmatmul.mubr.f32.gmra.mrb[0].mxu0 %v71
    %v579 = vpop.f32.mrb[0].mxu0
    %v580 = vadd.f32 %v230, %v579
    %v581 = vpop.f32.mrb[0].mxu0
    %v582 = vadd.f32 %v234, %v581
    %583 = vmatprep.mubr.f32.mxu0 0.0
    %584 = vmatmul.mubr.f32.gmra.mrb[0].mxu0 %v72
    %v585 = vpop.f32.mrb[0].mxu0
    %v586 = vadd.f32 %v230, %v585
    %v587 = vpop.f32.mrb[0].mxu0
    %v588 = vadd.f32 %v234, %v587
    %589 = vdwg.mxu0
    %590 = vmatprep.subr.mxu0 %v88
    %591 = vmatpush1.msra.mxu0 %v87
    %592 = vmatprep.subr.mxu0 %v96
    %593 = vmatpush1.msra.mxu0 %v95
    %594 = vmatprep.subr.mxu0 %v104
    %595 = vmatpush1.msra.mxu0 %v103
    %596 = vmatprep.subr.mxu0 %v112
    %597 = vmatpush1.msra.mxu0 %v111
    %598 = vmatprep.subr.mxu0 %v120
    %599 = vmatpush1.msra.mxu0 %v119
    %600 = vmatprep.subr.mxu0 %v128
    %601 = vmatpush1.msra.mxu0 %v127
    %602 = vmatprep.subr.mxu0 %v136
    %603 = vmatpush1.msra.mxu0 %v135
    %604 = vmatprep.subr.mxu0 %v144
    %605 = vmatpush1.msra.mxu0 %v143
    %606 = vmatprep.subr.mxu0 %v152
    %607 = vmatpush1.msra.mxu0 %v151
    %608 = vmatprep.subr.mxu0 %v160
    %609 = vmatpush1.msra.mxu0 %v159
    %610 = vmatprep.subr.mxu0 %v168
    %611 = vmatpush1.msra.mxu0 %v167
    %612 = vmatprep.subr.mxu0 %v176
    %613 = vmatpush1.msra.mxu0 %v175
    %614 = vmatprep.subr.mxu0 %v184
    %615 = vmatpush1.msra.mxu0 %v183
    %616 = vmatprep.subr.mxu0 %v192
    %617 = vmatpush1.msra.mxu0 %v191
    %618 = vmatprep.subr.mxu0 %v200
    %619 = vmatpush1.msra.mxu0 %v199
    %620 = vmatprep.subr.mxu0 %v208
    %621 = vmatpush1.msra.mxu0 %v207
    %622 = vmatprep.subr.mxu0 0.0
    %623 = vmatpush1.msra.mxu0 0.0
    %624 = vmatprep.subr.mxu0 0.0
    %625 = vmatpush1.msra.mxu0 0.0
    %626 = vmatprep.subr.mxu0 0.0
    %627 = vmatpush1.msra.mxu0 0.0
    %628 = vmatprep.subr.mxu0 0.0
    %629 = vmatpush1.msra.mxu0 0.0
    %630 = vmatprep.subr.mxu0 0.0
    %631 = vmatpush1.msra.mxu0 0.0
    %632 = vmatprep.subr.mxu0 0.0
    %633 = vmatpush1.msra.mxu0 0.0
    %634 = vmatprep.subr.mxu0 0.0
    %635 = vmatpush1.msra.mxu0 0.0
    %636 = vmatprep.subr.mxu0 0.0
    %637 = vmatpush1.msra.mxu0 0.0
    %638 = vmatprep.subr.mxu0 0.0
    %639 = vmatpush1.msra.mxu0 0.0
    %640 = vmatprep.subr.mxu0 0.0
    %641 = vmatpush1.msra.mxu0 0.0
    %642 = vmatprep.subr.mxu0 0.0
    %643 = vmatpush1.msra.mxu0 0.0
    %644 = vmatprep.subr.mxu0 0.0
    %645 = vmatpush1.msra.mxu0 0.0
    %646 = vmatprep.subr.mxu0 0.0
    %647 = vmatpush1.msra.mxu0 0.0
    %648 = vmatprep.subr.mxu0 0.0
    %649 = vmatpush1.msra.mxu0 0.0
    %650 = vmatprep.subr.mxu0 0.0
    %651 = vmatpush1.msra.mxu0 0.0
    %652 = vmatprep.subr.mxu0 0.0
    %653 = vmatpush1.msra.mxu0 0.0
    %654 = vmatprep.mubr.f32.mxu0 0.0
    %655 = vmatmul.mubr.f32.gmra.mrb[0].mxu0 %v65
    %v656 = vpop.f32.mrb[0].mxu0
    %v657 = vadd.f32 %v238, %v656
    %v658 = vpop.f32.mrb[0].mxu0
    %v659 = vadd.f32 %v242, %v658
    %660 = vmatprep.mubr.f32.mxu0 0.0
    %661 = vmatmul.mubr.f32.gmra.mrb[0].mxu0 %v66
    %v662 = vpop.f32.mrb[0].mxu0
    %v663 = vadd.f32 %v238, %v662
    %v664 = vpop.f32.mrb[0].mxu0
    %v665 = vadd.f32 %v242, %v664
    %666 = vmatprep.mubr.f32.mxu0 0.0
    %667 = vmatmul.mubr.f32.gmra.mrb[0].mxu0 %v67
    %v668 = vpop.f32.mrb[0].mxu0
    %v669 = vadd.f32 %v238, %v668
    %v670 = vpop.f32.mrb[0].mxu0
    %v671 = vadd.f32 %v242, %v670
    %672 = vmatprep.mubr.f32.mxu0 0.0
    %673 = vmatmul.mubr.f32.gmra.mrb[0].mxu0 %v68
    %v674 = vpop.f32.mrb[0].mxu0
    %v675 = vadd.f32 %v238, %v674
    %v676 = vpop.f32.mrb[0].mxu0
    %v677 = vadd.f32 %v242, %v676
    %678 = vmatprep.mubr.f32.mxu0 0.0
    %679 = vmatmul.mubr.f32.gmra.mrb[0].mxu0 %v69
    %v680 = vpop.f32.mrb[0].mxu0
    %v681 = vadd.f32 %v238, %v680
    %v682 = vpop.f32.mrb[0].mxu0
    %v683 = vadd.f32 %v242, %v682
    %684 = vmatprep.mubr.f32.mxu0 0.0
    %685 = vmatmul.mubr.f32.gmra.mrb[0].mxu0 %v70
    %v686 = vpop.f32.mrb[0].mxu0
    %v687 = vadd.f32 %v238, %v686
    %v688 = vpop.f32.mrb[0].mxu0
    %v689 = vadd.f32 %v242, %v688
    %690 = vmatprep.mubr.f32.mxu0 0.0
    %691 = vmatmul.mubr.f32.gmra.mrb[0].mxu0 %v71
    %v692 = vpop.f32.mrb[0].mxu0
    %v693 = vadd.f32 %v238, %v692
    %v694 = vpop.f32.mrb[0].mxu0
    %v695 = vadd.f32 %v242, %v694
    %696 = vmatprep.mubr.f32.mxu0 0.0
    %697 = vmatmul.mubr.f32.gmra.mrb[0].mxu0 %v72
    %v698 = vpop.f32.mrb[0].mxu0
    %v699 = vadd.f32 %v238, %v698
    %v700 = vpop.f32.mrb[0].mxu0
    %v701 = vadd.f32 %v242, %v700
    %702 = vdwg.mxu0
    %703 = vst [vmem:[#allocation9] sm:$0xff] %v318
    %704 = vst [vmem:[#allocation9 + $0x8] sm:$0xff] %v320
    %705 = vst [vmem:[#allocation9 + $0x10] sm:$0xff] %v431
    %706 = vst [vmem:[#allocation9 + $0x18] sm:$0xff] %v433
    %707 = vst [vmem:[#allocation9 + $0x20] sm:$0xff] %v544
    %708 = vst [vmem:[#allocation9 + $0x28] sm:$0xff] %v546
    %709 = vst [vmem:[#allocation9 + $0x30] sm:$0xff] %v657
    %710 = vst [vmem:[#allocation9 + $0x38] sm:$0xff] %v659
    %711 = vst [vmem:[#allocation9 + $0x40] sm:$0xff] %v324
    %712 = vst [vmem:[#allocation9 + $0x48] sm:$0xff] %v326
    %713 = vst [vmem:[#allocation9 + $0x50] sm:$0xff] %v437
    %714 = vst [vmem:[#allocation9 + $0x58] sm:$0xff] %v439
    %715 = vst [vmem:[#allocation9 + $0x60] sm:$0xff] %v550
    %716 = vst [vmem:[#allocation9 + $0x68] sm:$0xff] %v552
    %717 = vst [vmem:[#allocation9 + $0x70] sm:$0xff] %v663
    %718 = vst [vmem:[#allocation9 + $0x78] sm:$0xff] %v665
    %719 = vst [vmem:[#allocation9 + $0x80] sm:$0xff] %v330
    %720 = vst [vmem:[#allocation9 + $0x88] sm:$0xff] %v332
    %721 = vst [vmem:[#allocation9 + $0x90] sm:$0xff] %v443
    %722 = vst [vmem:[#allocation9 + $0x98] sm:$0xff] %v445
    %723 = vst [vmem:[#allocation9 + $0xa0] sm:$0xff] %v556
    %724 = vst [vmem:[#allocation9 + $0xa8] sm:$0xff] %v558
    %725 = vst [vmem:[#allocation9 + $0xb0] sm:$0xff] %v669
    %726 = vst [vmem:[#allocation9 + $0xb8] sm:$0xff] %v671
    %727 = vst [vmem:[#allocation9 + $0xc0] sm:$0xff] %v336
    %728 = vst [vmem:[#allocation9 + $0xc8] sm:$0xff] %v338
    %729 = vst [vmem:[#allocation9 + $0xd0] sm:$0xff] %v449
    %730 = vst [vmem:[#allocation9 + $0xd8] sm:$0xff] %v451
    %731 = vst [vmem:[#allocation9 + $0xe0] sm:$0xff] %v562
    %732 = vst [vmem:[#allocation9 + $0xe8] sm:$0xff] %v564
    %733 = vst [vmem:[#allocation9 + $0xf0] sm:$0xff] %v675
    %734 = vst [vmem:[#allocation9 + $0xf8] sm:$0xff] %v677
    %735 = vst [vmem:[#allocation9 + $0x100] sm:$0xff] %v342
    %736 = vst [vmem:[#allocation9 + $0x108] sm:$0xff] %v344
    %737 = vst [vmem:[#allocation9 + $0x110] sm:$0xff] %v455
    %738 = vst [vmem:[#allocation9 + $0x118] sm:$0xff] %v457
    %739 = vst [vmem:[#allocation9 + $0x120] sm:$0xff] %v568
    %740 = vst [vmem:[#allocation9 + $0x128] sm:$0xff] %v570
    %741 = vst [vmem:[#allocation9 + $0x130] sm:$0xff] %v681
    %742 = vst [vmem:[#allocation9 + $0x138] sm:$0xff] %v683
    %743 = vst [vmem:[#allocation9 + $0x140] sm:$0xff] %v348
    %744 = vst [vmem:[#allocation9 + $0x148] sm:$0xff] %v350
    %745 = vst [vmem:[#allocation9 + $0x150] sm:$0xff] %v461
    %746 = vst [vmem:[#allocation9 + $0x158] sm:$0xff] %v463
    %747 = vst [vmem:[#allocation9 + $0x160] sm:$0xff] %v574
    %748 = vst [vmem:[#allocation9 + $0x168] sm:$0xff] %v576
    %749 = vst [vmem:[#allocation9 + $0x170] sm:$0xff] %v687
    %750 = vst [vmem:[#allocation9 + $0x178] sm:$0xff] %v689
    %751 = vst [vmem:[#allocation9 + $0x180] sm:$0xff] %v354
    %752 = vst [vmem:[#allocation9 + $0x188] sm:$0xff] %v356
    %753 = vst [vmem:[#allocation9 + $0x190] sm:$0xff] %v467
    %754 = vst [vmem:[#allocation9 + $0x198] sm:$0xff] %v469
    %755 = vst [vmem:[#allocation9 + $0x1a0] sm:$0xff] %v580
    %756 = vst [vmem:[#allocation9 + $0x1a8] sm:$0xff] %v582
    %757 = vst [vmem:[#allocation9 + $0x1b0] sm:$0xff] %v693
    %758 = vst [vmem:[#allocation9 + $0x1b8] sm:$0xff] %v695
    %759 = vst [vmem:[#allocation9 + $0x1c0] sm:$0xff] %v360
    %760 = vst [vmem:[#allocation9 + $0x1c8] sm:$0xff] %v362
    %761 = vst [vmem:[#allocation9 + $0x1d0] sm:$0xff] %v473
    %762 = vst [vmem:[#allocation9 + $0x1d8] sm:$0xff] %v475
    %763 = vst [vmem:[#allocation9 + $0x1e0] sm:$0xff] %v586
    %764 = vst [vmem:[#allocation9 + $0x1e8] sm:$0xff] %v588
    %765 = vst [vmem:[#allocation9 + $0x1f0] sm:$0xff] %v699
    %766 = vst [vmem:[#allocation9 + $0x1f8] sm:$0xff] %v701
    // Predicated region
    $region26: #{tpu_custom_call.1} parent=1 // pred_check
      _
    $region27: #{tpu_custom_call.1} parent=1 // pred_check_branch
      %768 = sbr.rel (0) target = $region29
    $region28: #{tpu_custom_call.1} parent=1 // pred_region
      %s770 = ssub.s32 1024, 1024
      %771 = vsyncadd [#allocation4], %s770
      %s772 = sshll.u32 [#allocation8], 4
      %s773 = int_to_ptr.vmem [resolvable:$true] %s772
      %778 = dma.vmem_to_hbm [thread:$0]  %s773, 1024, %s3, [#allocation4], 128, 128, 8
    $region29: #{tpu_custom_call.1} parent=1 // pred_fallthru
      _
    // Predicated region
    $region30: #{tpu_custom_call.1} parent=1 // pred_check
      _
    $region31: #{tpu_custom_call.1} parent=1 // pred_check_branch
      %780 = sbr.rel (0) target = $region33
    $region32: #{tpu_custom_call.1} parent=1 // pred_region
      %s782 = ssub.s32 8192, 8192
      %783 = vsyncadd [#allocation10], %s782
      %s784 = sshll.u32 [#allocation9], 4
      %s785 = int_to_ptr.vmem [resolvable:$true] %s784
      %790 = dma.vmem_to_hbm [thread:$0]  %s785, 8192, %s4, [#allocation10], 1024, 1024, 64
    $region33: #{tpu_custom_call.1} parent=1 // pred_fallthru
      _
    // Predicated region
    $region34: #{tpu_custom_call.1} parent=1 // pred_check
      _
    $region35: #{tpu_custom_call.1} parent=1 // pred_check_branch
      %792 = sbr.rel (0) target = $region37
    $region36: #{tpu_custom_call.1} parent=1 // pred_region
      %793 = dma.done [#allocation4], 1024
    $region37: #{tpu_custom_call.1} parent=1 // pred_fallthru
      _
    // Predicated region
    $region38: #{tpu_custom_call.1} parent=1 // pred_check
      _
    $region39: #{tpu_custom_call.1} parent=1 // pred_check_branch
      %795 = sbr.rel (0) target = $region41
    $region40: #{tpu_custom_call.1} parent=1 // pred_region
      %796 = dma.done [#allocation10], 8192
    $region41: #{tpu_custom_call.1} parent=1 // pred_fallthru
      _
    %797 = vsyncpa [#allocation3], 1
    %798 = vsyncpa [#allocation6], 1
    %799 = vsyncpa [#allocation4], 1
    %800 = vsyncpa [#allocation10], 1

</llo_original>
